<compile_context>
chip_gen: v6e
topology: v6e:2x2x1
jax: 0.10.0
libtpu: 0.0.40
codegen_flags: <defaults>
</compile_context>

<pallas_src>
import functools

import jax
import jax.numpy as jnp
import numpy as np
from jax.experimental import pallas as pl
from jax.experimental.pallas import tpu as pltpu

BN_EPS = 1e-5  # PyTorch BatchNorm1d default eps


# ---------------------------------------------------------------------------
# Generation-aware sizing.
# ---------------------------------------------------------------------------
def _tpu_vmem_capacity_bytes():
    try:
        info = pltpu.get_tpu_info()
        cap = getattr(info, "vmem_capacity_bytes", None)
        if cap:
            return int(cap)
    except Exception:
        pass
    return 64 << 20  # conservative default (v7x per-core VMEM)


_VMEM_CAP = _tpu_vmem_capacity_bytes()
_VMEM_ALLOW = int(0.85 * _VMEM_CAP)          # leave headroom for Mosaic
_TILE_CAP = 1024 if _VMEM_CAP >= (100 << 20) else 512   # v5e/v6e vs v7x


def _round_up(x, m):
    return (x + m - 1) // m * m


def _pad_dim(d):
    """Pad only to the next multiple of 128 (no tile round-up waste)."""
    return _round_up(d, 128)


def _pick_tile(dim_padded, cap):
    """Largest multiple of 128 that divides dim_padded and is <= cap."""
    best = 128
    t = 128
    limit = min(dim_padded, cap)
    while t <= limit:
        if dim_padded % t == 0:
            best = t
        t += 128
    return best


def _apply_activation(y, activation):
    if activation == "relu":
        return jnp.maximum(y, 0.0)
    if activation == "sigmoid":
        return jax.nn.sigmoid(y)
    if activation == "tanh":
        return jnp.tanh(y)
    if activation == "leakyrelu":
        return jnp.where(y > 0, y, 0.01 * y)
    if activation == "selu":
        return jax.nn.selu(y)
    return y


def _bn_act(y, gamma, beta, activation):
    """BatchNorm1d (training-mode batch stats over the full batch) + act."""
    mean = jnp.mean(y, axis=0, keepdims=True)
    var = jnp.mean(jnp.square(y - mean), axis=0, keepdims=True)
    y = (y - mean) * jax.lax.rsqrt(var + BN_EPS)
    y = y * gamma + beta
    return _apply_activation(y, activation)


# ---------------------------------------------------------------------------
# Fused encoder kernel: streamed first Linear + VMEM-resident later layers.
# ---------------------------------------------------------------------------
def _encoder_epilogue(y, layer_refs, o_ref, num_layers, activation):
    # Layer 0 BN + activation.
    y = _bn_act(y, layer_refs[1][...], layer_refs[2][...], activation)
    # Layers 1..L-1: Linear (VMEM-resident weights) + BN + activation, all on
    # local values — intermediates never touch HBM.
    for i in range(1, num_layers):
        w_ref = layer_refs[3 * i]
        g_ref = layer_refs[3 * i + 1]
        b_ref = layer_refs[3 * i + 2]
        y = jnp.dot(y.astype(w_ref.dtype), w_ref[...],
                    preferred_element_type=jnp.float32)
        y = _bn_act(y, g_ref[...], b_ref[...], activation)
    o_ref[...] = y.astype(o_ref.dtype)


def _fused_encoder_kernel(*refs, num_layers, activation, single_k):
    x_ref = refs[0]
    layer_refs = refs[1:1 + 3 * num_layers]
    o_ref = refs[1 + 3 * num_layers]
    w0_ref = layer_refs[0]

    if single_k:
        # Single-K specialization: no accumulator scratch, no pl.when.
        y = jnp.dot(x_ref[...], w0_ref[...], preferred_element_type=jnp.float32)
        _encoder_epilogue(y, layer_refs, o_ref, num_layers, activation)
    else:
        acc_ref = refs[2 + 3 * num_layers]
        k = pl.program_id(0)

        @pl.when(k == 0)
        def _init():
            acc_ref[...] = jnp.zeros_like(acc_ref)

        acc_ref[...] += jnp.dot(x_ref[...], w0_ref[...],
                                preferred_element_type=jnp.float32)

        @pl.when(k == pl.num_programs(0) - 1)
        def _finalize():
            _encoder_epilogue(acc_ref[...], layer_refs, o_ref,
                              num_layers, activation)


def _encoder_budget_bytes(B, layers, tile_cap, out_size):
    """Estimated VMEM bytes for the fused call (double-buffered streams)."""
    Kp0, Np0 = layers[0][0].shape
    tk = _pick_tile(Kp0, tile_cap)
    budget = 2 * B * tk * 2                 # streamed x tile (bf16, 2 buffers)
    budget += 2 * tk * Np0 * 2              # streamed W0 tile (bf16, 2 buffers)
    if Kp0 // tk > 1:
        budget += B * Np0 * 4               # f32 accumulator scratch
    for (w, _, _) in layers[1:]:
        budget += 2 * w.size * 2            # VMEM-resident weights (2 buffers)
    for (_, g, b) in layers:
        budget += 2 * (g.size + b.size) * 4
    Np_last = layers[-1][0].shape[1]
    budget += 2 * B * Np_last * out_size    # output block (2 buffers)
    budget += 4 << 20                       # Mosaic internal scratch headroom
    return budget


def fused_encoder_forward(x_pad, layers, *, activation, out_dtype,
                          tile_cap=_TILE_CAP, vmem_allow=_VMEM_ALLOW):
    """x_pad: (B, Kp0) bf16, Kp0 % 128 == 0.

    layers: list of (W_pad (Kp_i, Np_i) bf16, gamma (1, Np_i) f32,
                     beta (1, Np_i) f32), all dims multiples of 128 and
                     Np_i == Kp_{i+1}.
    """
    B, Kp0 = x_pad.shape
    num_layers = len(layers)
    Np0 = layers[0][0].shape[1]
    Np_last = layers[-1][0].shape[1]
    assert Kp0 == layers[0][0].shape[0] and Kp0 % 128 == 0

    tk = _pick_tile(Kp0, tile_cap)
    num_k = Kp0 // tk
    single_k = num_k == 1
    out_size = jnp.dtype(out_dtype).itemsize

    budget = _encoder_budget_bytes(B, layers, tile_cap, out_size)
    vmem_limit = int(min(max(budget, 16 << 20), vmem_allow))

    # BlockSpecs: x / W0 streamed over K; everything else VMEM-resident
    # (constant block index -> fetched once).
    in_specs = [pl.BlockSpec((B, tk), lambda k: (0, k))]            # x
    in_specs.append(pl.BlockSpec((tk, Np0), lambda k: (k, 0)))      # W0
    in_specs.append(pl.BlockSpec((1, Np0), lambda k: (0, 0)))       # gamma0
    in_specs.append(pl.BlockSpec((1, Np0), lambda k: (0, 0)))       # beta0
    for (w, _, _) in layers[1:]:
        ni = w.shape[1]
        in_specs.append(pl.BlockSpec(w.shape, lambda k: (0, 0)))    # Wi
        in_specs.append(pl.BlockSpec((1, ni), lambda k: (0, 0)))    # gamma_i
        in_specs.append(pl.BlockSpec((1, ni), lambda k: (0, 0)))    # beta_i

    args = [x_pad]
    for (w, g, b) in layers:
        args.extend((w, g, b))

    scratch_shapes = [] if single_k else [pltpu.VMEM((B, Np0), jnp.float32)]

    flops = 0
    trans = 0
    bytes_acc = B * Kp0 * 2 + B * Np_last * out_size
    for (w, _, _) in layers:
        ki, ni = w.shape
        flops += 2 * B * ki * ni
        trans += ni + (B * ni if activation in ("sigmoid", "tanh", "selu") else 0)
        bytes_acc += ki * ni * 2 + 2 * ni * 4
    cost = pl.CostEstimate(flops=flops, transcendentals=trans,
                           bytes_accessed=bytes_acc)

    kernel = functools.partial(_fused_encoder_kernel, num_layers=num_layers,
                               activation=activation, single_k=single_k)

    return pl.pallas_call(
        kernel,
        out_shape=jax.ShapeDtypeStruct((B, Np_last), out_dtype),
        grid_spec=pltpu.PrefetchScalarGridSpec(
            num_scalar_prefetch=0,
            grid=(num_k,),
            in_specs=in_specs,
            out_specs=pl.BlockSpec((B, Np_last), lambda k: (0, 0)),
            scratch_shapes=scratch_shapes,
        ),
        compiler_params=pltpu.CompilerParams(
            dimension_semantics=("arbitrary",),
            vmem_limit_bytes=vmem_limit,
        ),
        cost_estimate=cost,
    )(*args)


# ---------------------------------------------------------------------------
# Encoder wrapper (deterministic PyTorch-default-style init).
# ---------------------------------------------------------------------------
class EncoderPallas:
    """JAX/Pallas re-implementation of scTFBridge Encoder.forward (mask=None)."""

    def __init__(self, key, input_dim, hidden_dims, activation=None, mask=None):
        if mask is not None:
            # TODO(synk): MaskedLinear first-layer path not implemented (the
            # reference Encoder calls MaskedLinear with a missing latent_dim
            # argument, so only the mask=None path is reachable anyway).
            raise NotImplementedError("mask path not supported")
        self.activation = activation
        dims = [input_dim] + list(hidden_dims)
        self.out_dim = hidden_dims[-1]
        self.pad_dims = [_pad_dim(d) for d in dims]

        keys = jax.random.split(key, len(hidden_dims))
        self.params = []       # (W_pad bf16, gamma f32, beta f32)
        self.ref_weights = []  # unpadded f32 weights for the pure-JAX reference
        for i in range(len(hidden_dims)):
            bound = 1.0 / float(dims[i]) ** 0.5
            w = jax.random.uniform(keys[i], (dims[i], dims[i + 1]), jnp.float32,
                                   -bound, bound)
            # nn.Linear bias dropped: cancelled by BN's batch-mean subtraction.
            w_pad = jnp.zeros((self.pad_dims[i], self.pad_dims[i + 1]),
                              jnp.float32)
            w_pad = w_pad.at[:dims[i], :dims[i + 1]].set(w).astype(jnp.bfloat16)
            gamma = jnp.ones((1, self.pad_dims[i + 1]), jnp.float32)
            beta = jnp.zeros((1, self.pad_dims[i + 1]), jnp.float32)
            self.params.append((w_pad, gamma, beta))
            self.ref_weights.append(w)

    def __call__(self, x):
        B, d = x.shape
        pad = self.pad_dims[0] - d
        h = jnp.pad(x, ((0, 0), (0, pad))) if pad else x
        h = h.astype(jnp.bfloat16)

        full_budget = _encoder_budget_bytes(B, self.params, _TILE_CAP, 4)
        if full_budget <= _VMEM_ALLOW:
            # One fused pallas_call for the whole stack.
            out = fused_encoder_forward(h, self.params,
                                        activation=self.activation,
                                        out_dtype=jnp.float32)
        else:
            # TODO(synk): greedy multi-layer chunking would cut more HBM
            # round-trips; fall back to one fused Linear+BN+act per layer.
            n = len(self.params)
            out = h
            for i, layer in enumerate(self.params):
                last = i == n - 1
                out = fused_encoder_forward(
                    out, [layer], activation=self.activation,
                    out_dtype=jnp.float32 if last else jnp.bfloat16)
        return out[:, :self.out_dim]

    def reference(self, x):
        """Pure-JAX f32 reference matching the PyTorch forward (eval dropout)."""
        h = x
        for w in self.ref_weights:
            y = h @ w
            mean = jnp.mean(y, axis=0, keepdims=True)
            var = jnp.mean((y - mean) ** 2, axis=0, keepdims=True)
            y = (y - mean) * jax.lax.rsqrt(var + BN_EPS)   # gamma=1, beta=0
            h = _apply_activation(y, self.activation)
        return h


if __name__ == "__main__":
    key = jax.random.PRNGKey(0)

    configs = [
        # (batch, input_dim, hidden_dims, activation)
        (8, 256, [64, 32], "relu"),       # single-K fast path
        (16, 2048, [96, 48], "sigmoid"),  # K-reduction grid + awkward dims
    ]

    for idx, (batch, input_dim, hidden_dims, activation) in enumerate(configs):
        k_param, k_data = jax.random.split(jax.random.fold_in(key, idx))
        model = EncoderPallas(k_param, input_dim, hidden_dims,
                              activation=activation)
        x = jax.random.normal(k_data, (batch, input_dim), jnp.float32)

        fwd = jax.jit(lambda v, m=model: m(v))
        out = fwd(x)
        jax.block_until_ready(out)

        assert out.shape == (batch, hidden_dims[-1])
        assert bool(jnp.all(jnp.isfinite(out)))

        # Pure-JAX f32 reference check (bf16 MXU feeds -> loose tolerance).
        ref = model.reference(x)
        np.testing.assert_allclose(np.asarray(out), np.asarray(ref),
                                   atol=0.1, rtol=0.1)

    print("KERNEL_OK")
</pallas_src>

<mosaic_0001>
module attributes {stable_mosaic.version = 11 : i64} {
  func.func @_fused_encoder_kernel(%arg0: i32, %arg1: memref<8x256xbf16, #tpu.memory_space<vmem>>, %arg2: memref<256x128xbf16, #tpu.memory_space<vmem>>, %arg3: memref<1x128xf32, #tpu.memory_space<vmem>>, %arg4: memref<1x128xf32, #tpu.memory_space<vmem>>, %arg5: memref<128x128xbf16, #tpu.memory_space<vmem>>, %arg6: memref<1x128xf32, #tpu.memory_space<vmem>>, %arg7: memref<1x128xf32, #tpu.memory_space<vmem>>, %arg8: memref<8x128xf32, #tpu.memory_space<vmem>>) attributes {dimension_semantics = [#tpu.dimension_semantics<arbitrary>], iteration_bounds = array<i64: 1>, scalar_prefetch = 0 : i64, scratch_operands = 0 : i64, tpu.core_type = #tpu.core_type<tc>, window_params = [{transform_indices = @transform_0, window_bounds = array<i64: 8, 256>}, {transform_indices = @transform_1, window_bounds = array<i64: 256, 128>}, {pipeline_mode = #tpu.pipeline_mode<synchronous>, transform_indices = @transform_2, window_bounds = array<i64: 1, 128>}, {pipeline_mode = #tpu.pipeline_mode<synchronous>, transform_indices = @transform_3, window_bounds = array<i64: 1, 128>}, {pipeline_mode = #tpu.pipeline_mode<synchronous>, transform_indices = @transform_4, window_bounds = array<i64: 128, 128>}, {pipeline_mode = #tpu.pipeline_mode<synchronous>, transform_indices = @transform_5, window_bounds = array<i64: 1, 128>}, {pipeline_mode = #tpu.pipeline_mode<synchronous>, transform_indices = @transform_6, window_bounds = array<i64: 1, 128>}, {pipeline_mode = #tpu.pipeline_mode<synchronous>, transform_indices = @transform_7, window_bounds = array<i64: 8, 128>}]} {
    %c0 = arith.constant 0 : index
    %c0_0 = arith.constant 0 : index
    %0 = vector.load %arg1[%c0, %c0_0] : memref<8x256xbf16, #tpu.memory_space<vmem>>, vector<8x256xbf16>
    %c0_1 = arith.constant 0 : index
    %c0_2 = arith.constant 0 : index
    %1 = vector.load %arg2[%c0_1, %c0_2] : memref<256x128xbf16, #tpu.memory_space<vmem>>, vector<256x128xbf16>
    %cst = arith.constant dense<0.000000e+00> : vector<8x128xf32>
    %2 = tpu.matmul %0, %1, %cst {dimension_numbers = #tpu.dot_dimension_numbers<[1], [0], [0], [1], [0, 0, 1, 1], [], []>} : vector<8x256xbf16>, vector<256x128xbf16>, vector<8x128xf32> -> vector<8x128xf32>
    %c0_3 = arith.constant 0 : index
    %c0_4 = arith.constant 0 : index
    %3 = vector.load %arg3[%c0_3, %c0_4] : memref<1x128xf32, #tpu.memory_space<vmem>>, vector<1x128xf32>
    %c0_5 = arith.constant 0 : index
    %c0_6 = arith.constant 0 : index
    %4 = vector.load %arg4[%c0_5, %c0_6] : memref<1x128xf32, #tpu.memory_space<vmem>>, vector<1x128xf32>
    %cst_7 = arith.constant dense<0.000000e+00> : vector<128xf32>
    %5 = vector.multi_reduction <add>, %2, %cst_7 [0] : vector<8x128xf32> to vector<128xf32>
    %6 = vector.shape_cast %5 : vector<128xf32> to vector<1x128xf32>
    %cst_8 = arith.constant 8.000000e+00 : f32
    %7 = vector.broadcast %cst_8 : f32 to vector<1x128xf32>
    %8 = arith.divf %6, %7 : vector<1x128xf32>
    %9 = vector.broadcast %8 : vector<1x128xf32> to vector<8x128xf32>
    %10 = arith.subf %2, %9 : vector<8x128xf32>
    %11 = arith.mulf %10, %10 : vector<8x128xf32>
    %cst_9 = arith.constant dense<0.000000e+00> : vector<128xf32>
    %12 = vector.multi_reduction <add>, %11, %cst_9 [0] : vector<8x128xf32> to vector<128xf32>
    %13 = vector.shape_cast %12 : vector<128xf32> to vector<1x128xf32>
    %cst_10 = arith.constant 8.000000e+00 : f32
    %14 = vector.broadcast %cst_10 : f32 to vector<1x128xf32>
    %15 = arith.divf %13, %14 : vector<1x128xf32>
    %16 = vector.broadcast %8 : vector<1x128xf32> to vector<8x128xf32>
    %17 = arith.subf %2, %16 : vector<8x128xf32>
    %cst_11 = arith.constant 9.99999974E-6 : f32
    %18 = vector.broadcast %cst_11 : f32 to vector<1x128xf32>
    %19 = arith.addf %15, %18 : vector<1x128xf32>
    %20 = math.rsqrt %19 : vector<1x128xf32>
    %21 = vector.broadcast %20 : vector<1x128xf32> to vector<8x128xf32>
    %22 = arith.mulf %17, %21 : vector<8x128xf32>
    %23 = vector.broadcast %3 : vector<1x128xf32> to vector<8x128xf32>
    %24 = arith.mulf %22, %23 : vector<8x128xf32>
    %25 = vector.broadcast %4 : vector<1x128xf32> to vector<8x128xf32>
    %26 = arith.addf %24, %25 : vector<8x128xf32>
    %cst_12 = arith.constant 0.000000e+00 : f32
    %27 = vector.broadcast %cst_12 : f32 to vector<8x128xf32>
    %28 = arith.maximumf %26, %27 : vector<8x128xf32>
    %29 = arith.truncf %28 : vector<8x128xf32> to vector<8x128xbf16>
    %c0_13 = arith.constant 0 : index
    %c0_14 = arith.constant 0 : index
    %30 = vector.load %arg5[%c0_13, %c0_14] : memref<128x128xbf16, #tpu.memory_space<vmem>>, vector<128x128xbf16>
    %cst_15 = arith.constant dense<0.000000e+00> : vector<8x128xf32>
    %31 = tpu.matmul %29, %30, %cst_15 {dimension_numbers = #tpu.dot_dimension_numbers<[1], [0], [0], [1], [0, 0, 1, 1], [], []>} : vector<8x128xbf16>, vector<128x128xbf16>, vector<8x128xf32> -> vector<8x128xf32>
    %c0_16 = arith.constant 0 : index
    %c0_17 = arith.constant 0 : index
    %32 = vector.load %arg6[%c0_16, %c0_17] : memref<1x128xf32, #tpu.memory_space<vmem>>, vector<1x128xf32>
    %c0_18 = arith.constant 0 : index
    %c0_19 = arith.constant 0 : index
    %33 = vector.load %arg7[%c0_18, %c0_19] : memref<1x128xf32, #tpu.memory_space<vmem>>, vector<1x128xf32>
    %cst_20 = arith.constant dense<0.000000e+00> : vector<128xf32>
    %34 = vector.multi_reduction <add>, %31, %cst_20 [0] : vector<8x128xf32> to vector<128xf32>
    %35 = vector.shape_cast %34 : vector<128xf32> to vector<1x128xf32>
    %cst_21 = arith.constant 8.000000e+00 : f32
    %36 = vector.broadcast %cst_21 : f32 to vector<1x128xf32>
    %37 = arith.divf %35, %36 : vector<1x128xf32>
    %38 = vector.broadcast %37 : vector<1x128xf32> to vector<8x128xf32>
    %39 = arith.subf %31, %38 : vector<8x128xf32>
    %40 = arith.mulf %39, %39 : vector<8x128xf32>
    %cst_22 = arith.constant dense<0.000000e+00> : vector<128xf32>
    %41 = vector.multi_reduction <add>, %40, %cst_22 [0] : vector<8x128xf32> to vector<128xf32>
    %42 = vector.shape_cast %41 : vector<128xf32> to vector<1x128xf32>
    %cst_23 = arith.constant 8.000000e+00 : f32
    %43 = vector.broadcast %cst_23 : f32 to vector<1x128xf32>
    %44 = arith.divf %42, %43 : vector<1x128xf32>
    %45 = vector.broadcast %37 : vector<1x128xf32> to vector<8x128xf32>
    %46 = arith.subf %31, %45 : vector<8x128xf32>
    %cst_24 = arith.constant 9.99999974E-6 : f32
    %47 = vector.broadcast %cst_24 : f32 to vector<1x128xf32>
    %48 = arith.addf %44, %47 : vector<1x128xf32>
    %49 = math.rsqrt %48 : vector<1x128xf32>
    %50 = vector.broadcast %49 : vector<1x128xf32> to vector<8x128xf32>
    %51 = arith.mulf %46, %50 : vector<8x128xf32>
    %52 = vector.broadcast %32 : vector<1x128xf32> to vector<8x128xf32>
    %53 = arith.mulf %51, %52 : vector<8x128xf32>
    %54 = vector.broadcast %33 : vector<1x128xf32> to vector<8x128xf32>
    %55 = arith.addf %53, %54 : vector<8x128xf32>
    %cst_25 = arith.constant 0.000000e+00 : f32
    %56 = vector.broadcast %cst_25 : f32 to vector<8x128xf32>
    %57 = arith.maximumf %55, %56 : vector<8x128xf32>
    %c0_26 = arith.constant 0 : index
    %c0_27 = arith.constant 0 : index
    %58 = vector.load %arg8[%c0_26, %c0_27] : memref<8x128xf32, #tpu.memory_space<vmem>>, vector<8x128xf32>
    tpu.vector_store %arg8[%c0_26, %c0_27], %57 {strides = array<i32>} : memref<8x128xf32, #tpu.memory_space<vmem>>, vector<8x128xf32>,
    return
  }
  func.func @transform_0(%arg0: i32) -> (i32, i32) {
    %c0_i32 = arith.constant 0 : i32
    %c0_i32_0 = arith.constant 0 : i32
    return %c0_i32, %arg0 : i32, i32
  }
  func.func @transform_1(%arg0: i32) -> (i32, i32) {
    %c0_i32 = arith.constant 0 : i32
    %c0_i32_0 = arith.constant 0 : i32
    return %arg0, %c0_i32 : i32, i32
  }
  func.func @transform_2(%arg0: i32) -> (i32, i32) {
    %c0_i32 = arith.constant 0 : i32
    %c0_i32_0 = arith.constant 0 : i32
    %c0_i32_1 = arith.constant 0 : i32
    return %c0_i32, %c0_i32_0 : i32, i32
  }
  func.func @transform_3(%arg0: i32) -> (i32, i32) {
    %c0_i32 = arith.constant 0 : i32
    %c0_i32_0 = arith.constant 0 : i32
    %c0_i32_1 = arith.constant 0 : i32
    return %c0_i32, %c0_i32_0 : i32, i32
  }
  func.func @transform_4(%arg0: i32) -> (i32, i32) {
    %c0_i32 = arith.constant 0 : i32
    %c0_i32_0 = arith.constant 0 : i32
    %c0_i32_1 = arith.constant 0 : i32
    return %c0_i32, %c0_i32_0 : i32, i32
  }
  func.func @transform_5(%arg0: i32) -> (i32, i32) {
    %c0_i32 = arith.constant 0 : i32
    %c0_i32_0 = arith.constant 0 : i32
    %c0_i32_1 = arith.constant 0 : i32
    return %c0_i32, %c0_i32_0 : i32, i32
  }
  func.func @transform_6(%arg0: i32) -> (i32, i32) {
    %c0_i32 = arith.constant 0 : i32
    %c0_i32_0 = arith.constant 0 : i32
    %c0_i32_1 = arith.constant 0 : i32
    return %c0_i32, %c0_i32_0 : i32, i32
  }
  func.func @transform_7(%arg0: i32) -> (i32, i32) {
    %c0_i32 = arith.constant 0 : i32
    %c0_i32_0 = arith.constant 0 : i32
    %c0_i32_1 = arith.constant 0 : i32
    return %c0_i32, %c0_i32_0 : i32, i32
  }
}

</mosaic_0001>

<llo_original>
// kernel: _lambda_.1
$region0: #{_lambda_.1}
  #allocation0 [shape = 'u32[]', space=smem, size = 0x4, offset = 0x4, fixed_abs, tag = 'smem constant byte address 0x4 - core index']
  #allocation1 [shape = 'u32[144,128]{1,0:T(1,128)}', space=vmem, size = 0x12000, scoped, tag = 'internal scratch']
  %s0 = inlined_call_operand.vmem [shape: bf16[8,256], index: 0, kind: input, shape index: {}]
  %s1 = inlined_call_operand.hbm [shape: bf16[256,128], index: 1, kind: input, shape index: {}]
  %s2 = inlined_call_operand.vmem [shape: f32[1,128], index: 2, kind: input, shape index: {}, may-alias: {2,5}]
  %s3 = inlined_call_operand.vmem [shape: f32[1,128], index: 3, kind: input, shape index: {}, may-alias: {3,6}]
  %s4 = inlined_call_operand.hbm [shape: bf16[128,128], index: 4, kind: input, shape index: {}]
  %s5 = inlined_call_operand.vmem [shape: f32[1,128], index: 5, kind: input, shape index: {}, may-alias: {2,5}]
  %s6 = inlined_call_operand.vmem [shape: f32[1,128], index: 6, kind: input, shape index: {}, may-alias: {3,6}]
  %s7 = inlined_call_operand.hbm [shape: f32[8,128], index: 7, kind: output, shape index: {}]
  %s8 = sld [smem:[#allocation0]]
  $region46: #{_lambda_.1} parent=0
    _
  %s10 = ssub.s32 1, %s8
  %s11 = scalar_select 0, %s10, %s8
  $region1: #{_lambda_.1} parent=0
    #allocation2 [shape = 'u8[65536]{0}', space=vmem, size = 0x10000, scoped, tag = 'input window, operand 1, single buffered']
    #allocation3 [shape = 's32[1]{0}', space=sflag, size = 0x4, scoped, tag = 'scoped memory for _lambda_.1']
    #allocation4 [shape = 's32[1]{0}', space=sflag, size = 0x4, scoped, tag = 'scoped memory for _lambda_.1']
    #allocation5 [shape = 'u8[32768]{0}', space=vmem, size = 0x8000, scoped, tag = 'input window, operand 4, single buffered']
    #allocation6 [shape = 's32[1]{0}', space=sflag, size = 0x4, scoped, tag = 'scoped memory for _lambda_.1']
    #allocation7 [shape = 'u8[4096]{0}', space=vmem, size = 0x1000, scoped, tag = 'output window, operand 0, single buffered']
    %12 = vsyncpa [#allocation3], 0
    %13 = vsyncpa [#allocation6], 0
    %14 = vsyncpa [#allocation4], 0
    // Predicated region
    $region2: #{_lambda_.1} parent=1 // pred_check
      _
    $region3: #{_lambda_.1} parent=1 // pred_check_branch
      %16 = sbr.rel (0) target = $region5
    $region4: #{_lambda_.1} parent=1 // pred_region
      _
    $region5: #{_lambda_.1} parent=1 // pred_fallthru
      _
    // Predicated region
    $region6: #{_lambda_.1} parent=1 // pred_check
      _
    $region7: #{_lambda_.1} parent=1 // pred_check_branch
      %18 = sbr.rel (0) target = $region9
    $region8: #{_lambda_.1} parent=1 // pred_region
      %s20 = ssub.s32 2048, 2048
      %21 = vsyncadd [#allocation3], %s20
      %s22 = sshll.u32 [#allocation2], 4
      %s23 = int_to_ptr.vmem [resolvable:$true] %s22
      %28 = dma.hbm_to_vmem [thread:$0]  %s1, 2048, %s23, [#allocation3], 64, 64, 4
    $region9: #{_lambda_.1} parent=1 // pred_fallthru
      _
    // Predicated region
    $region10: #{_lambda_.1} parent=1 // pred_check
      _
    $region11: #{_lambda_.1} parent=1 // pred_check_branch
      %30 = sbr.rel (0) target = $region13
    $region12: #{_lambda_.1} parent=1 // pred_region
      _
    $region13: #{_lambda_.1} parent=1 // pred_fallthru
      _
    // Predicated region
    $region14: #{_lambda_.1} parent=1 // pred_check
      _
    $region15: #{_lambda_.1} parent=1 // pred_check_branch
      %32 = sbr.rel (0) target = $region17
    $region16: #{_lambda_.1} parent=1 // pred_region
      _
    $region17: #{_lambda_.1} parent=1 // pred_fallthru
      _
    // Predicated region
    $region18: #{_lambda_.1} parent=1 // pred_check
      _
    $region19: #{_lambda_.1} parent=1 // pred_check_branch
      %34 = sbr.rel (0) target = $region21
    $region20: #{_lambda_.1} parent=1 // pred_region
      %s36 = ssub.s32 1024, 1024
      %37 = vsyncadd [#allocation6], %s36
      %s38 = sshll.u32 [#allocation5], 4
      %s39 = int_to_ptr.vmem [resolvable:$true] %s38
      %44 = dma.hbm_to_vmem [thread:$0]  %s4, 1024, %s39, [#allocation6], 64, 64, 4
    $region21: #{_lambda_.1} parent=1 // pred_fallthru
      _
    // Predicated region
    $region22: #{_lambda_.1} parent=1 // pred_check
      _
    $region23: #{_lambda_.1} parent=1 // pred_check_branch
      %46 = sbr.rel (0) target = $region25
    $region24: #{_lambda_.1} parent=1 // pred_region
      _
    $region25: #{_lambda_.1} parent=1 // pred_fallthru
      _
    // Predicated region
    $region26: #{_lambda_.1} parent=1 // pred_check
      _
    $region27: #{_lambda_.1} parent=1 // pred_check_branch
      %48 = sbr.rel (0) target = $region29
    $region28: #{_lambda_.1} parent=1 // pred_region
      _
    $region29: #{_lambda_.1} parent=1 // pred_fallthru
      _
    // Predicated region
    $region30: #{_lambda_.1} parent=1 // pred_check
      _
    $region31: #{_lambda_.1} parent=1 // pred_check_branch
      %50 = sbr.rel (0) target = $region33
    $region32: #{_lambda_.1} parent=1 // pred_region
      %51 = dma.done [#allocation3], 2048
    $region33: #{_lambda_.1} parent=1 // pred_fallthru
      _
    // Predicated region
    $region34: #{_lambda_.1} parent=1 // pred_check
      _
    $region35: #{_lambda_.1} parent=1 // pred_check_branch
      %53 = sbr.rel (0) target = $region37
    $region36: #{_lambda_.1} parent=1 // pred_region
      %54 = dma.done [#allocation6], 1024
    $region37: #{_lambda_.1} parent=1 // pred_fallthru
      _
    %v56 = vld [vmem:[%s0] sm:$0xff]
    %v57 = vld [vmem:[#allocation2] sm:$0xf]
    %v58 = vld [vmem:[#allocation2 + $0x4] sm:$0xf]
    %v59 = vld [vmem:[#allocation2 + $0x8] sm:$0xf]
    %v60 = vld [vmem:[#allocation2 + $0xc] sm:$0xf]
    %v61 = vld [vmem:[#allocation2 + $0x10] sm:$0xf]
    %v62 = vld [vmem:[#allocation2 + $0x14] sm:$0xf]
    %v63 = vld [vmem:[#allocation2 + $0x18] sm:$0xf]
    %v64 = vld [vmem:[#allocation2 + $0x1c] sm:$0xf]
    %v65 = vld [vmem:[#allocation2 + $0x20] sm:$0xf]
    %v66 = vld [vmem:[#allocation2 + $0x24] sm:$0xf]
    %v67 = vld [vmem:[#allocation2 + $0x28] sm:$0xf]
    %v68 = vld [vmem:[#allocation2 + $0x2c] sm:$0xf]
    %v69 = vld [vmem:[#allocation2 + $0x30] sm:$0xf]
    %v70 = vld [vmem:[#allocation2 + $0x34] sm:$0xf]
    %v71 = vld [vmem:[#allocation2 + $0x38] sm:$0xf]
    %v72 = vld [vmem:[#allocation2 + $0x3c] sm:$0xf]
    %v73 = vld [vmem:[#allocation2 + $0x40] sm:$0xf]
    %v74 = vld [vmem:[#allocation2 + $0x44] sm:$0xf]
    %v75 = vld [vmem:[#allocation2 + $0x48] sm:$0xf]
    %v76 = vld [vmem:[#allocation2 + $0x4c] sm:$0xf]
    %v77 = vld [vmem:[#allocation2 + $0x50] sm:$0xf]
    %v78 = vld [vmem:[#allocation2 + $0x54] sm:$0xf]
    %v79 = vld [vmem:[#allocation2 + $0x58] sm:$0xf]
    %v80 = vld [vmem:[#allocation2 + $0x5c] sm:$0xf]
    %v81 = vld [vmem:[#allocation2 + $0x60] sm:$0xf]
    %v82 = vld [vmem:[#allocation2 + $0x64] sm:$0xf]
    %v83 = vld [vmem:[#allocation2 + $0x68] sm:$0xf]
    %v84 = vld [vmem:[#allocation2 + $0x6c] sm:$0xf]
    %v85 = vld [vmem:[#allocation2 + $0x70] sm:$0xf]
    %v86 = vld [vmem:[#allocation2 + $0x74] sm:$0xf]
    %v87 = vld [vmem:[#allocation2 + $0x78] sm:$0xf]
    %v88 = vld [vmem:[#allocation2 + $0x7c] sm:$0xf]
    %v90 = vunpack.c.l.b16 %v56
    %v91 = vunpack.c.h.b16 %v56
    %v92 = vpack.c.b16 %v90, %v90
    %v93 = vpack.c.b16 %v91, %v91
    %v128 = vunpack.c.l.b16 %v57
    %v129 = vunpack.c.l.b16 %v58
    %v130 = vunpack.c.l.b16 %v59
    %v131 = vunpack.c.l.b16 %v60
    %v132 = vunpack.c.l.b16 %v61
    %v133 = vunpack.c.l.b16 %v62
    %v134 = vunpack.c.l.b16 %v63
    %v135 = vunpack.c.l.b16 %v64
    %v136 = vunpack.c.l.b16 %v65
    %v137 = vunpack.c.l.b16 %v66
    %v138 = vunpack.c.l.b16 %v67
    %v139 = vunpack.c.l.b16 %v68
    %v140 = vunpack.c.l.b16 %v69
    %v141 = vunpack.c.l.b16 %v70
    %v142 = vunpack.c.l.b16 %v71
    %v143 = vunpack.c.l.b16 %v72
    %v144 = vunpack.c.l.b16 %v73
    %v145 = vunpack.c.l.b16 %v74
    %v146 = vunpack.c.l.b16 %v75
    %v147 = vunpack.c.l.b16 %v76
    %v148 = vunpack.c.l.b16 %v77
    %v149 = vunpack.c.l.b16 %v78
    %v150 = vunpack.c.l.b16 %v79
    %v151 = vunpack.c.l.b16 %v80
    %v152 = vunpack.c.l.b16 %v81
    %v153 = vunpack.c.l.b16 %v82
    %v154 = vunpack.c.l.b16 %v83
    %v155 = vunpack.c.l.b16 %v84
    %v156 = vunpack.c.l.b16 %v85
    %v157 = vunpack.c.l.b16 %v86
    %v158 = vunpack.c.l.b16 %v87
    %v159 = vunpack.c.l.b16 %v88
    %v160 = vpack.c.b16 %v129, %v128
    %v161 = vpack.c.b16 %v131, %v130
    %v162 = vpack.c.b16 %v133, %v132
    %v163 = vpack.c.b16 %v135, %v134
    %v164 = vpack.c.b16 %v137, %v136
    %v165 = vpack.c.b16 %v139, %v138
    %v166 = vpack.c.b16 %v141, %v140
    %v167 = vpack.c.b16 %v143, %v142
    %v168 = vpack.c.b16 %v145, %v144
    %v169 = vpack.c.b16 %v147, %v146
    %v170 = vpack.c.b16 %v149, %v148
    %v171 = vpack.c.b16 %v151, %v150
    %v172 = vpack.c.b16 %v153, %v152
    %v173 = vpack.c.b16 %v155, %v154
    %v174 = vpack.c.b16 %v157, %v156
    %v175 = vpack.c.b16 %v159, %v158
    %192 = vmatprep.subr.bf16.mxu0 0
    %193 = vmatpush1.bf16.msra.mxu0 %v167
    %194 = vmatprep.subr.bf16.mxu0 0
    %195 = vmatpush1.bf16.msra.mxu0 %v166
    %196 = vmatprep.subr.bf16.mxu0 0
    %197 = vmatpush1.bf16.msra.mxu0 %v165
    %198 = vmatprep.subr.bf16.mxu0 0
    %199 = vmatpush1.bf16.msra.mxu0 %v164
    %200 = vmatprep.subr.bf16.mxu0 0
    %201 = vmatpush1.bf16.msra.mxu0 %v163
    %202 = vmatprep.subr.bf16.mxu0 0
    %203 = vmatpush1.bf16.msra.mxu0 %v162
    %204 = vmatprep.subr.bf16.mxu0 0
    %205 = vmatpush1.bf16.msra.mxu0 %v161
    %206 = vmatprep.subr.bf16.mxu0 0
    %207 = vmatpush1.bf16.msra.mxu0 %v160
    %208 = vmatprep.subr.bf16.mxu0 0
    %209 = vmatpush2.bf16.msra.mxu0 %v175
    %210 = vmatprep.subr.bf16.mxu0 0
    %211 = vmatpush2.bf16.msra.mxu0 %v174
    %212 = vmatprep.subr.bf16.mxu0 0
    %213 = vmatpush2.bf16.msra.mxu0 %v173
    %214 = vmatprep.subr.bf16.mxu0 0
    %215 = vmatpush2.bf16.msra.mxu0 %v172
    %216 = vmatprep.subr.bf16.mxu0 0
    %217 = vmatpush2.bf16.msra.mxu0 %v171
    %218 = vmatprep.subr.bf16.mxu0 0
    %219 = vmatpush2.bf16.msra.mxu0 %v170
    %220 = vmatprep.subr.bf16.mxu0 0
    %221 = vmatpush2.bf16.msra.mxu0 %v169
    %222 = vmatprep.subr.bf16.mxu0 0
    %223 = vmatpush2.bf16.msra.mxu0 %v168
    %224 = vmatprep.mubr.bf16.mxu0 %v93
    %225 = vmatmul.mubr.bf16.gmra.mxu0 %v92
    %v226 = vpop.f32.mrf.mxu0
    %v227 = vadd.f32 0.0, %v226
    %v228 = vpop.f32.mrf.mxu0
    %v229 = vpop.f32.mrf.mxu0
    %v230 = vpop.f32.mrf.mxu0
    %231 = vdwg.mxu0
    %v232 = vld [vmem:[%s2] sm:$0x1]
    %v233 = vld [vmem:[%s3] sm:$0x1]
    %v234 = vrot.slane %v227, 4
    %v235 = vadd.f32 %v227, %v234
    %v236 = vrot.slane %v235, 2
    %v237 = vadd.f32 %v235, %v236
    %v238 = vrot.slane %v237, 1
    %v239 = vadd.f32 %v237, %v238
    %v240 = vrcp.pop 8.0
    %v241 = vmul.f32 %v239, %v240
    %v242 = vsub.f32 %v227, %v241
    %v243 = vmul.f32 %v242, %v242
    %v244 = vrot.slane %v243, 4
    %v245 = vadd.f32 %v243, %v244
    %v246 = vrot.slane %v245, 2
    %v247 = vadd.f32 %v245, %v246
    %v248 = vrot.slane %v247, 1
    %v249 = vadd.f32 %v247, %v248
    %v250 = vmul.f32 %v249, %v240
    %v251 = vadd.f32 %v250, 1e-05
    %v252 = vrsqrt.pop %v251
    %v253 = vmul.f32 %v242, %v252
    %v255 = vlaneseq
    %v256 = vshrl.u32 %v255, 7
    %v257 = vsub.s32 0, %v256
    %v258 = vrot.slane %v232, %v257
    %v260 = vmul.f32 %v253, %v258
    %v262 = vlaneseq
    %v263 = vshrl.u32 %v262, 7
    %v264 = vsub.s32 0, %v263
    %v265 = vrot.slane %v233, %v264
    %v267 = vadd.f32 %v260, %v265
    %v268 = vmax.f32 %v267, 0.0
    %v269 = vpack.c.bf16 %v268, %v268
    %v270 = vld [vmem:[#allocation5] sm:$0xf]
    %v271 = vld [vmem:[#allocation5 + $0x4] sm:$0xf]
    %v272 = vld [vmem:[#allocation5 + $0x8] sm:$0xf]
    %v273 = vld [vmem:[#allocation5 + $0xc] sm:$0xf]
    %v274 = vld [vmem:[#allocation5 + $0x10] sm:$0xf]
    %v275 = vld [vmem:[#allocation5 + $0x14] sm:$0xf]
    %v276 = vld [vmem:[#allocation5 + $0x18] sm:$0xf]
    %v277 = vld [vmem:[#allocation5 + $0x1c] sm:$0xf]
    %v278 = vld [vmem:[#allocation5 + $0x20] sm:$0xf]
    %v279 = vld [vmem:[#allocation5 + $0x24] sm:$0xf]
    %v280 = vld [vmem:[#allocation5 + $0x28] sm:$0xf]
    %v281 = vld [vmem:[#allocation5 + $0x2c] sm:$0xf]
    %v282 = vld [vmem:[#allocation5 + $0x30] sm:$0xf]
    %v283 = vld [vmem:[#allocation5 + $0x34] sm:$0xf]
    %v284 = vld [vmem:[#allocation5 + $0x38] sm:$0xf]
    %v285 = vld [vmem:[#allocation5 + $0x3c] sm:$0xf]
    %v302 = vunpack.c.l.b16 %v270
    %v303 = vunpack.c.l.b16 %v271
    %v304 = vunpack.c.l.b16 %v272
    %v305 = vunpack.c.l.b16 %v273
    %v306 = vunpack.c.l.b16 %v274
    %v307 = vunpack.c.l.b16 %v275
    %v308 = vunpack.c.l.b16 %v276
    %v309 = vunpack.c.l.b16 %v277
    %v310 = vunpack.c.l.b16 %v278
    %v311 = vunpack.c.l.b16 %v279
    %v312 = vunpack.c.l.b16 %v280
    %v313 = vunpack.c.l.b16 %v281
    %v314 = vunpack.c.l.b16 %v282
    %v315 = vunpack.c.l.b16 %v283
    %v316 = vunpack.c.l.b16 %v284
    %v317 = vunpack.c.l.b16 %v285
    %v318 = vpack.c.b16 %v303, %v302
    %v319 = vpack.c.b16 %v305, %v304
    %v320 = vpack.c.b16 %v307, %v306
    %v321 = vpack.c.b16 %v309, %v308
    %v322 = vpack.c.b16 %v311, %v310
    %v323 = vpack.c.b16 %v313, %v312
    %v324 = vpack.c.b16 %v315, %v314
    %v325 = vpack.c.b16 %v317, %v316
    %334 = vmatprep.subr.bf16.mxu0 0
    %335 = vmatpush1.bf16.msra.mxu0 %v325
    %336 = vmatprep.subr.bf16.mxu0 0
    %337 = vmatpush1.bf16.msra.mxu0 %v324
    %338 = vmatprep.subr.bf16.mxu0 0
    %339 = vmatpush1.bf16.msra.mxu0 %v323
    %340 = vmatprep.subr.bf16.mxu0 0
    %341 = vmatpush1.bf16.msra.mxu0 %v322
    %342 = vmatprep.subr.bf16.mxu0 0
    %343 = vmatpush1.bf16.msra.mxu0 %v321
    %344 = vmatprep.subr.bf16.mxu0 0
    %345 = vmatpush1.bf16.msra.mxu0 %v320
    %346 = vmatprep.subr.bf16.mxu0 0
    %347 = vmatpush1.bf16.msra.mxu0 %v319
    %348 = vmatprep.subr.bf16.mxu0 0
    %349 = vmatpush1.bf16.msra.mxu0 %v318
    %350 = vmatprep.subr.bf16.mxu0 0
    %351 = vmatpush2.bf16.msra.mxu0 0
    %352 = vmatprep.subr.bf16.mxu0 0
    %353 = vmatpush2.bf16.msra.mxu0 0
    %354 = vmatprep.subr.bf16.mxu0 0
    %355 = vmatpush2.bf16.msra.mxu0 0
    %356 = vmatprep.subr.bf16.mxu0 0
    %357 = vmatpush2.bf16.msra.mxu0 0
    %358 = vmatprep.subr.bf16.mxu0 0
    %359 = vmatpush2.bf16.msra.mxu0 0
    %360 = vmatprep.subr.bf16.mxu0 0
    %361 = vmatpush2.bf16.msra.mxu0 0
    %362 = vmatprep.subr.bf16.mxu0 0
    %363 = vmatpush2.bf16.msra.mxu0 0
    %364 = vmatprep.subr.bf16.mxu0 0
    %365 = vmatpush2.bf16.msra.mxu0 0
    %366 = vmatprep.mubr.bf16.mxu0 0
    %367 = vmatmul.mubr.bf16.gmra.mxu0 %v269
    %v368 = vpop.f32.mrf.mxu0
    %v369 = vadd.f32 0.0, %v368
    %v370 = vpop.f32.mrf.mxu0
    %v371 = vpop.f32.mrf.mxu0
    %v372 = vpop.f32.mrf.mxu0
    %373 = vdwg.mxu0
    %v374 = vld [vmem:[%s5] sm:$0x1]
    %v375 = vld [vmem:[%s6] sm:$0x1]
    %v376 = vrot.slane %v369, 4
    %v377 = vadd.f32 %v369, %v376
    %v378 = vrot.slane %v377, 2
    %v379 = vadd.f32 %v377, %v378
    %v380 = vrot.slane %v379, 1
    %v381 = vadd.f32 %v379, %v380
    %v382 = vmul.f32 %v381, %v240
    %v383 = vsub.f32 %v369, %v382
    %v384 = vmul.f32 %v383, %v383
    %v385 = vrot.slane %v384, 4
    %v386 = vadd.f32 %v384, %v385
    %v387 = vrot.slane %v386, 2
    %v388 = vadd.f32 %v386, %v387
    %v389 = vrot.slane %v388, 1
    %v390 = vadd.f32 %v388, %v389
    %v391 = vmul.f32 %v390, %v240
    %v392 = vadd.f32 %v391, 1e-05
    %v393 = vrsqrt.pop %v392
    %v394 = vmul.f32 %v383, %v393
    %v396 = vlaneseq
    %v397 = vshrl.u32 %v396, 7
    %v398 = vsub.s32 0, %v397
    %v399 = vrot.slane %v374, %v398
    %v401 = vmul.f32 %v394, %v399
    %v403 = vlaneseq
    %v404 = vshrl.u32 %v403, 7
    %v405 = vsub.s32 0, %v404
    %v406 = vrot.slane %v375, %v405
    %v408 = vadd.f32 %v401, %v406
    %v409 = vmax.f32 %v408, 0.0
    %410 = vst [vmem:[#allocation7] sm:$0xff] %v409
    // Predicated region
    $region38: #{_lambda_.1} parent=1 // pred_check
      _
    $region39: #{_lambda_.1} parent=1 // pred_check_branch
      %412 = sbr.rel (0) target = $region41
    $region40: #{_lambda_.1} parent=1 // pred_region
      %s414 = ssub.s32 128, 128
      %415 = vsyncadd [#allocation4], %s414
      %s417 = sshll.u32 [#allocation7], 4
      %s418 = int_to_ptr.vmem [resolvable:$true] %s417
      %420 = dma.vmem_to_hbm [thread:$0]  %s418, 128, %s7, [#allocation4]
    $region41: #{_lambda_.1} parent=1 // pred_fallthru
      _
    // Predicated region
    $region42: #{_lambda_.1} parent=1 // pred_check
      _
    $region43: #{_lambda_.1} parent=1 // pred_check_branch
      %422 = sbr.rel (0) target = $region45
    $region44: #{_lambda_.1} parent=1 // pred_region
      %423 = dma.done [#allocation4], 128
    $region45: #{_lambda_.1} parent=1 // pred_fallthru
      _
    %424 = vsyncpa [#allocation3], 1
    %425 = vsyncpa [#allocation6], 1
    %426 = vsyncpa [#allocation4], 1

</llo_original>
